<compile_context>
chip_gen: v7x
topology: tpu7x:2x2x1
jax: 0.10.0
libtpu: 0.0.40
codegen_flags: <defaults>
</compile_context>

<pallas_src>
import functools

import jax
import jax.numpy as jnp
import numpy as np
from jax import lax
from jax.experimental import pallas as pl
from jax.experimental.pallas import tpu as pltpu


# ----------------------------------------------------------------------------
# tiling helpers
# ----------------------------------------------------------------------------
def _row_tile(rows, max_tile=512):
    """Row-tile for the projection/embedding matmuls: whole array if small,
    otherwise a multiple of 8 (boundary blocks are handled by Pallas)."""
    if rows <= max_tile:
        return rows
    for tm in range(max_tile, 7, -8):
        if rows % tm == 0:
            return tm
    return max_tile


def _time_chunk(T, max_chunk=32):
    """Largest divisor of T that is <= max_chunk (timesteps per grid step)."""
    for tt in range(min(T, max_chunk), 0, -1):
        if T % tt == 0:
            return tt
    return 1


# ----------------------------------------------------------------------------
# Pallas kernels
# ----------------------------------------------------------------------------
def _input_proj_kernel(x_ref, wih_f_ref, wih_b_ref, bf_ref, bb_ref,
                       gf_ref, gb_ref):
    """gin_dir = x @ W_ih_dir + bias_dir for both directions, row-tiled."""
    x = x_ref[...]
    gf_ref[...] = (jnp.dot(x, wih_f_ref[...], preferred_element_type=jnp.float32)
                   + bf_ref[...]).astype(gf_ref.dtype)
    gb_ref[...] = (jnp.dot(x, wih_b_ref[...], preferred_element_type=jnp.float32)
                   + bb_ref[...]).astype(gb_ref.dtype)


def _lstm_recurrence_kernel(H, Tt,
                            gf_ref, gb_ref, whh_f_ref, whh_b_ref,
                            of_ref, ob_ref,
                            hf, cf, hb, cb):
    """One grid step == Tt timesteps. Forward walks its chunk 0..Tt-1;
    backward walks its (time-reversed) chunk Tt-1..0. Only h @ W_hh per step;
    the x-projection and bias were hoisted into phase 1."""

    @pl.when(pl.program_id(0) == 0)
    def _():
        hf[...] = jnp.zeros_like(hf)
        cf[...] = jnp.zeros_like(cf)
        hb[...] = jnp.zeros_like(hb)
        cb[...] = jnp.zeros_like(cb)

    # Hoist the weight loads out of the time loop (they live in VMEM).
    w_f = whh_f_ref[...]
    w_b = whh_b_ref[...]

    def cell(gates_in, w_hh, h, c):
        gates = gates_in + jnp.dot(h, w_hh, preferred_element_type=jnp.float32)
        i = jax.nn.sigmoid(gates[:, 0 * H:1 * H])
        f = jax.nn.sigmoid(gates[:, 1 * H:2 * H])
        g = jnp.tanh(gates[:, 2 * H:3 * H])
        o = jax.nn.sigmoid(gates[:, 3 * H:4 * H])
        c_new = f * c + i * g
        h_new = o * jnp.tanh(c_new)
        return h_new, c_new

    def step(s, carry):
        # forward direction: local time index s
        h_new, c_new = cell(gf_ref[s], w_f, hf[...], cf[...])
        hf[...] = h_new
        cf[...] = c_new
        of_ref[s] = h_new

        # backward direction: local time index Tt-1-s (chunk already reversed
        # via the BlockSpec index_map, so this walks global time T-1 .. 0)
        sb = Tt - 1 - s
        h_new, c_new = cell(gb_ref[sb], w_b, hb[...], cb[...])
        hb[...] = h_new
        cb[...] = c_new
        ob_ref[sb] = h_new
        return carry

    lax.fori_loop(0, Tt, step, 0, unroll=Tt <= 16)


def _embedding_kernel(hf_ref, hb_ref, wf_ref, wb_ref, b_ref, o_ref):
    """out = h_fwd @ W_f + h_bwd @ W_b + b  (fused concat-free linear)."""
    acc = jnp.dot(hf_ref[...], wf_ref[...], preferred_element_type=jnp.float32)
    acc = acc + jnp.dot(hb_ref[...], wb_ref[...],
                        preferred_element_type=jnp.float32)
    o_ref[...] = (acc + b_ref[...]).astype(o_ref.dtype)


# ----------------------------------------------------------------------------
# Wrapper
# ----------------------------------------------------------------------------
def bidir_lstm_pallas(x, params):
    """x: (T, B, D) float32 -> (T, B, output_dim)."""
    T, B, D = x.shape
    H = params["whh_f"].shape[0]
    H4 = 4 * H
    out_dim = params["w_emb_f"].shape[1]
    f32 = jnp.float32
    rows = T * B

    # ---------------- phase 1: hoisted input projection ----------------
    tm = _row_tile(rows)
    x_flat = x.reshape(rows, D)
    proj = pl.pallas_call(
        _input_proj_kernel,
        out_shape=(jax.ShapeDtypeStruct((rows, H4), f32),
                   jax.ShapeDtypeStruct((rows, H4), f32)),
        grid_spec=pltpu.PrefetchScalarGridSpec(
            num_scalar_prefetch=0,
            grid=(pl.cdiv(rows, tm),),
            in_specs=[
                pl.BlockSpec((tm, D), lambda r: (r, 0)),     # x rows
                pl.BlockSpec((D, H4), lambda r: (0, 0)),     # W_ih fwd
                pl.BlockSpec((D, H4), lambda r: (0, 0)),     # W_ih bwd
                pl.BlockSpec((1, H4), lambda r: (0, 0)),     # bias fwd
                pl.BlockSpec((1, H4), lambda r: (0, 0)),     # bias bwd
            ],
            out_specs=[
                pl.BlockSpec((tm, H4), lambda r: (r, 0)),
                pl.BlockSpec((tm, H4), lambda r: (r, 0)),
            ],
        ),
        compiler_params=pltpu.CompilerParams(
            dimension_semantics=("parallel",)),
    )
    gin_f, gin_b = proj(x_flat, params["wih_f"], params["wih_b"],
                        params["bias_f"], params["bias_b"])
    gin_f = gin_f.reshape(T, B, H4)
    gin_b = gin_b.reshape(T, B, H4)

    # ---------------- phase 2: chunked bidirectional recurrence ----------------
    Tt = _time_chunk(T)
    G = T // Tt
    lstm = pl.pallas_call(
        functools.partial(_lstm_recurrence_kernel, H, Tt),
        out_shape=(jax.ShapeDtypeStruct((T, B, H), f32),
                   jax.ShapeDtypeStruct((T, B, H), f32)),
        grid_spec=pltpu.PrefetchScalarGridSpec(
            num_scalar_prefetch=0,
            grid=(G,),
            in_specs=[
                pl.BlockSpec((Tt, B, H4), lambda g: (g, 0, 0)),          # gin fwd
                pl.BlockSpec((Tt, B, H4), lambda g: (G - 1 - g, 0, 0)),  # gin bwd
                pl.BlockSpec((H, H4), lambda g: (0, 0)),                 # W_hh fwd
                pl.BlockSpec((H, H4), lambda g: (0, 0)),                 # W_hh bwd
            ],
            out_specs=[
                pl.BlockSpec((Tt, B, H), lambda g: (g, 0, 0)),           # h fwd
                pl.BlockSpec((Tt, B, H), lambda g: (G - 1 - g, 0, 0)),   # h bwd
            ],
            scratch_shapes=[
                pltpu.VMEM((B, H), f32),   # hf
                pltpu.VMEM((B, H), f32),   # cf
                pltpu.VMEM((B, H), f32),   # hb
                pltpu.VMEM((B, H), f32),   # cb
            ],
        ),
        compiler_params=pltpu.CompilerParams(
            dimension_semantics=("arbitrary",)),   # sequential recurrence
    )
    out_f, out_b = lstm(gin_f, gin_b, params["whh_f"], params["whh_b"])

    # ---------------- phase 3: fused output projection (no concat) -------------
    hf_flat = out_f.reshape(rows, H)
    hb_flat = out_b.reshape(rows, H)
    emb = pl.pallas_call(
        _embedding_kernel,
        out_shape=jax.ShapeDtypeStruct((rows, out_dim), f32),
        grid_spec=pltpu.PrefetchScalarGridSpec(
            num_scalar_prefetch=0,
            grid=(pl.cdiv(rows, tm),),
            in_specs=[
                pl.BlockSpec((tm, H), lambda r: (r, 0)),
                pl.BlockSpec((tm, H), lambda r: (r, 0)),
                pl.BlockSpec((H, out_dim), lambda r: (0, 0)),
                pl.BlockSpec((H, out_dim), lambda r: (0, 0)),
                pl.BlockSpec((1, out_dim), lambda r: (0, 0)),
            ],
            out_specs=pl.BlockSpec((tm, out_dim), lambda r: (r, 0)),
        ),
        compiler_params=pltpu.CompilerParams(
            dimension_semantics=("parallel",)),
    )
    out = emb(hf_flat, hb_flat, params["w_emb_f"], params["w_emb_b"],
              params["b_emb"])
    return out.reshape(T, B, out_dim)


# ----------------------------------------------------------------------------
# Pure-JAX reference (PyTorch LSTM semantics) for validation
# ----------------------------------------------------------------------------
def bidir_lstm_ref(x, params):
    T, B, D = x.shape
    H = params["whh_f"].shape[0]

    def run(xseq, w_ih, w_hh, bias):
        def step(carry, xt):
            h, c = carry
            gates = xt @ w_ih + h @ w_hh + bias
            i = jax.nn.sigmoid(gates[:, 0 * H:1 * H])
            f = jax.nn.sigmoid(gates[:, 1 * H:2 * H])
            g = jnp.tanh(gates[:, 2 * H:3 * H])
            o = jax.nn.sigmoid(gates[:, 3 * H:4 * H])
            c = f * c + i * g
            h = o * jnp.tanh(c)
            return (h, c), h

        init = (jnp.zeros((B, H), jnp.float32), jnp.zeros((B, H), jnp.float32))
        _, hs = lax.scan(step, init, xseq)
        return hs

    hf = run(x, params["wih_f"], params["whh_f"], params["bias_f"])
    hb = run(x[::-1], params["wih_b"], params["whh_b"], params["bias_b"])[::-1]
    out = (hf.reshape(T * B, H) @ params["w_emb_f"]
           + hb.reshape(T * B, H) @ params["w_emb_b"]
           + params["b_emb"])
    return out.reshape(T, B, -1)


# ----------------------------------------------------------------------------
def init_params(key, input_dim, hidden_dim, output_dim):
    """Deterministic synthetic init (uniform(-1/sqrt(H), 1/sqrt(H)) like torch)."""
    k = 1.0 / np.sqrt(hidden_dim)
    ks = jax.random.split(key, 12)
    u = lambda kk, shape: jax.random.uniform(kk, shape, jnp.float32, -k, k)
    H4 = 4 * hidden_dim
    w_emb = u(ks[8], (2 * hidden_dim, output_dim))   # rows: [fwd H | bwd H]
    return {
        # stored transposed: x @ W, h @ W ; PyTorch gate order (i,f,g,o)
        "wih_f": u(ks[0], (input_dim, H4)),
        "whh_f": u(ks[1], (hidden_dim, H4)),
        "bias_f": u(ks[2], (1, H4)) + u(ks[3], (1, H4)),   # b_ih + b_hh folded
        "wih_b": u(ks[4], (input_dim, H4)),
        "whh_b": u(ks[5], (hidden_dim, H4)),
        "bias_b": u(ks[6], (1, H4)) + u(ks[7], (1, H4)),
        "w_emb_f": w_emb[:hidden_dim],                     # split -> no concat
        "w_emb_b": w_emb[hidden_dim:],
        "b_emb": u(ks[9], (1, output_dim)),
    }


if __name__ == "__main__":
    T, B, INPUT_DIM, HIDDEN_DIM, OUTPUT_DIM = 8, 2, 16, 32, 8

    key = jax.random.PRNGKey(0)
    kx, kp = jax.random.split(key)
    x = jax.random.normal(kx, (T, B, INPUT_DIM), jnp.float32)
    params = init_params(kp, INPUT_DIM, HIDDEN_DIM, OUTPUT_DIM)

    out = jax.block_until_ready(bidir_lstm_pallas(x, params))
    ref = jax.block_until_ready(bidir_lstm_ref(x, params))

    assert out.shape == (T, B, OUTPUT_DIM), out.shape
    np.testing.assert_allclose(np.asarray(out), np.asarray(ref),
                               rtol=1e-4, atol=1e-4)
    print("KERNEL_OK")
</pallas_src>

<mosaic_0001>
module attributes {stable_mosaic.version = 11 : i64} {
  func.func @_input_proj_kernel(%arg0: i32, %arg1: memref<16x16xf32, #tpu.memory_space<vmem>>, %arg2: memref<16x128xf32, #tpu.memory_space<vmem>>, %arg3: memref<16x128xf32, #tpu.memory_space<vmem>>, %arg4: memref<1x128xf32, #tpu.memory_space<vmem>>, %arg5: memref<1x128xf32, #tpu.memory_space<vmem>>, %arg6: memref<16x128xf32, #tpu.memory_space<vmem>>, %arg7: memref<16x128xf32, #tpu.memory_space<vmem>>) attributes {dimension_semantics = [#tpu.dimension_semantics<parallel>], iteration_bounds = array<i64: 1>, scalar_prefetch = 0 : i64, scratch_operands = 0 : i64, tpu.core_type = #tpu.core_type<tc>, window_params = [{transform_indices = @transform_0, window_bounds = array<i64: 16, 16>}, {pipeline_mode = #tpu.pipeline_mode<synchronous>, transform_indices = @transform_1, window_bounds = array<i64: 16, 128>}, {pipeline_mode = #tpu.pipeline_mode<synchronous>, transform_indices = @transform_2, window_bounds = array<i64: 16, 128>}, {pipeline_mode = #tpu.pipeline_mode<synchronous>, transform_indices = @transform_3, window_bounds = array<i64: 1, 128>}, {pipeline_mode = #tpu.pipeline_mode<synchronous>, transform_indices = @transform_4, window_bounds = array<i64: 1, 128>}, {transform_indices = @transform_5, window_bounds = array<i64: 16, 128>}, {transform_indices = @transform_6, window_bounds = array<i64: 16, 128>}]} {
    %c0 = arith.constant 0 : index
    %c0_0 = arith.constant 0 : index
    %0 = vector.load %arg1[%c0, %c0_0] : memref<16x16xf32, #tpu.memory_space<vmem>>, vector<16x16xf32>
    %c0_1 = arith.constant 0 : index
    %c0_2 = arith.constant 0 : index
    %1 = vector.load %arg2[%c0_1, %c0_2] : memref<16x128xf32, #tpu.memory_space<vmem>>, vector<16x128xf32>
    %cst = arith.constant dense<0.000000e+00> : vector<16x128xf32>
    %2 = tpu.matmul %0, %1, %cst {dimension_numbers = #tpu.dot_dimension_numbers<[1], [0], [0], [1], [0, 0, 1, 1], [], []>} : vector<16x16xf32>, vector<16x128xf32>, vector<16x128xf32> -> vector<16x128xf32>
    %c0_3 = arith.constant 0 : index
    %c0_4 = arith.constant 0 : index
    %3 = vector.load %arg4[%c0_3, %c0_4] : memref<1x128xf32, #tpu.memory_space<vmem>>, vector<1x128xf32>
    %4 = vector.broadcast %3 : vector<1x128xf32> to vector<16x128xf32>
    %5 = arith.addf %2, %4 : vector<16x128xf32>
    %c0_5 = arith.constant 0 : index
    %c0_6 = arith.constant 0 : index
    %6 = vector.load %arg6[%c0_5, %c0_6] : memref<16x128xf32, #tpu.memory_space<vmem>>, vector<16x128xf32>
    tpu.vector_store %arg6[%c0_5, %c0_6], %5 {strides = array<i32>} : memref<16x128xf32, #tpu.memory_space<vmem>>, vector<16x128xf32>,
    %c0_7 = arith.constant 0 : index
    %c0_8 = arith.constant 0 : index
    %7 = vector.load %arg3[%c0_7, %c0_8] : memref<16x128xf32, #tpu.memory_space<vmem>>, vector<16x128xf32>
    %cst_9 = arith.constant dense<0.000000e+00> : vector<16x128xf32>
    %8 = tpu.matmul %0, %7, %cst_9 {dimension_numbers = #tpu.dot_dimension_numbers<[1], [0], [0], [1], [0, 0, 1, 1], [], []>} : vector<16x16xf32>, vector<16x128xf32>, vector<16x128xf32> -> vector<16x128xf32>
    %c0_10 = arith.constant 0 : index
    %c0_11 = arith.constant 0 : index
    %9 = vector.load %arg5[%c0_10, %c0_11] : memref<1x128xf32, #tpu.memory_space<vmem>>, vector<1x128xf32>
    %10 = vector.broadcast %9 : vector<1x128xf32> to vector<16x128xf32>
    %11 = arith.addf %8, %10 : vector<16x128xf32>
    %c0_12 = arith.constant 0 : index
    %c0_13 = arith.constant 0 : index
    %12 = vector.load %arg7[%c0_12, %c0_13] : memref<16x128xf32, #tpu.memory_space<vmem>>, vector<16x128xf32>
    tpu.vector_store %arg7[%c0_12, %c0_13], %11 {strides = array<i32>} : memref<16x128xf32, #tpu.memory_space<vmem>>, vector<16x128xf32>,
    return
  }
  func.func @transform_0(%arg0: i32) -> (i32, i32) {
    %c0_i32 = arith.constant 0 : i32
    %c0_i32_0 = arith.constant 0 : i32
    return %arg0, %c0_i32 : i32, i32
  }
  func.func @transform_1(%arg0: i32) -> (i32, i32) {
    %c0_i32 = arith.constant 0 : i32
    %c0_i32_0 = arith.constant 0 : i32
    %c0_i32_1 = arith.constant 0 : i32
    return %c0_i32, %c0_i32_0 : i32, i32
  }
  func.func @transform_2(%arg0: i32) -> (i32, i32) {
    %c0_i32 = arith.constant 0 : i32
    %c0_i32_0 = arith.constant 0 : i32
    %c0_i32_1 = arith.constant 0 : i32
    return %c0_i32, %c0_i32_0 : i32, i32
  }
  func.func @transform_3(%arg0: i32) -> (i32, i32) {
    %c0_i32 = arith.constant 0 : i32
    %c0_i32_0 = arith.constant 0 : i32
    %c0_i32_1 = arith.constant 0 : i32
    return %c0_i32, %c0_i32_0 : i32, i32
  }
  func.func @transform_4(%arg0: i32) -> (i32, i32) {
    %c0_i32 = arith.constant 0 : i32
    %c0_i32_0 = arith.constant 0 : i32
    %c0_i32_1 = arith.constant 0 : i32
    return %c0_i32, %c0_i32_0 : i32, i32
  }
  func.func @transform_5(%arg0: i32) -> (i32, i32) {
    %c0_i32 = arith.constant 0 : i32
    %c0_i32_0 = arith.constant 0 : i32
    return %arg0, %c0_i32 : i32, i32
  }
  func.func @transform_6(%arg0: i32) -> (i32, i32) {
    %c0_i32 = arith.constant 0 : i32
    %c0_i32_0 = arith.constant 0 : i32
    return %arg0, %c0_i32 : i32, i32
  }
}

</mosaic_0001>

<llo_original>
// kernel: tpu_custom_call.1
$region0: #{tpu_custom_call.1}
  #allocation0 [shape = 'u32[]', space=smem, size = 0x4, offset = 0x4, fixed_abs, tag = 'smem constant byte address 0x4 - core index']
  #allocation1 [shape = 'u32[144,128]{1,0:T(1,128)}', space=vmem, size = 0x12000, scoped, tag = 'internal scratch']
  %s0 = inlined_call_operand.hbm [shape: f32[16,16], index: 0, kind: input, shape index: {}]
  %s1 = inlined_call_operand.hbm [shape: f32[16,128], index: 1, kind: input, shape index: {}]
  %s2 = inlined_call_operand.hbm [shape: f32[16,128], index: 2, kind: input, shape index: {}]
  %s3 = inlined_call_operand.vmem [shape: f32[1,128], index: 3, kind: input, shape index: {}]
  %s4 = inlined_call_operand.vmem [shape: f32[1,128], index: 4, kind: input, shape index: {}]
  %s5 = inlined_call_operand.hbm [shape: f32[16,128], index: 5, kind: output, shape index: {0}]
  %s6 = inlined_call_operand.hbm [shape: f32[16,128], index: 6, kind: output, shape index: {1}]
  %7 = xla_tuple %s5, %s6
  %s8 = sld [smem:[#allocation0]]
  $region50: #{tpu_custom_call.1} parent=0
    _
  %s10 = ssub.s32 1, %s8
  %s11 = scalar_select 0, %s10, %s8
  $region1: #{tpu_custom_call.1} parent=0
    #allocation2 [shape = 'u8[8192]{0}', space=vmem, size = 0x2000, scoped, tag = 'input window, operand 0, single buffered']
    #allocation3 [shape = 's32[1]{0}', space=sflag, size = 0x4, scoped, tag = 'scoped memory for tpu_custom_call.1']
    #allocation4 [shape = 's32[1]{0}', space=sflag, size = 0x4, scoped, tag = 'scoped memory for tpu_custom_call.1']
    #allocation5 [shape = 'u8[8192]{0}', space=vmem, size = 0x2000, scoped, tag = 'input window, operand 1, single buffered']
    #allocation6 [shape = 's32[1]{0}', space=sflag, size = 0x4, scoped, tag = 'scoped memory for tpu_custom_call.1']
    #allocation7 [shape = 'u8[8192]{0}', space=vmem, size = 0x2000, scoped, tag = 'input window, operand 2, single buffered']
    #allocation8 [shape = 'u8[8192]{0}', space=vmem, size = 0x2000, scoped, tag = 'output window, operand 0, single buffered']
    #allocation9 [shape = 'u8[8192]{0}', space=vmem, size = 0x2000, scoped, tag = 'output window, operand 1, single buffered']
    #allocation10 [shape = 's32[1]{0}', space=sflag, size = 0x4, scoped, tag = 'scoped memory for tpu_custom_call.1']
    %12 = vsyncpa [#allocation3], 0
    %13 = vsyncpa [#allocation6], 0
    %14 = vsyncpa [#allocation4], 0
    %15 = vsyncpa [#allocation10], 0
    // Predicated region
    $region2: #{tpu_custom_call.1} parent=1 // pred_check
      _
    $region3: #{tpu_custom_call.1} parent=1 // pred_check_branch
      %17 = sbr.rel (0) target = $region5
    $region4: #{tpu_custom_call.1} parent=1 // pred_region
      %s19 = ssub.s32 256, 256
      %20 = vsyncadd [#allocation3], %s19
      %s21 = sshll.u32 [#allocation2], 4
      %s22 = int_to_ptr.vmem [resolvable:$true] %s21
      %27 = dma.hbm_to_vmem [thread:$0]  %s0, 256, %s22, [#allocation3], 128, 128, 8
    $region5: #{tpu_custom_call.1} parent=1 // pred_fallthru
      _
    // Predicated region
    $region6: #{tpu_custom_call.1} parent=1 // pred_check
      _
    $region7: #{tpu_custom_call.1} parent=1 // pred_check_branch
      %29 = sbr.rel (0) target = $region9
    $region8: #{tpu_custom_call.1} parent=1 // pred_region
      %s31 = ssub.s32 256, 256
      %32 = vsyncadd [#allocation6], %s31
      %s33 = sshll.u32 [#allocation5], 4
      %s34 = int_to_ptr.vmem [resolvable:$true] %s33
      %39 = dma.hbm_to_vmem [thread:$0]  %s1, 256, %s34, [#allocation6], 128, 128, 8
    $region9: #{tpu_custom_call.1} parent=1 // pred_fallthru
      _
    // Predicated region
    $region10: #{tpu_custom_call.1} parent=1 // pred_check
      _
    $region11: #{tpu_custom_call.1} parent=1 // pred_check_branch
      %41 = sbr.rel (0) target = $region13
    $region12: #{tpu_custom_call.1} parent=1 // pred_region
      %s43 = ssub.s32 256, 256
      %44 = vsyncadd [#allocation6], %s43
      %s45 = sshll.u32 [#allocation7], 4
      %s46 = int_to_ptr.vmem [resolvable:$true] %s45
      %51 = dma.hbm_to_vmem [thread:$0]  %s2, 256, %s46, [#allocation6], 128, 128, 8
    $region13: #{tpu_custom_call.1} parent=1 // pred_fallthru
      _
    // Predicated region
    $region14: #{tpu_custom_call.1} parent=1 // pred_check
      _
    $region15: #{tpu_custom_call.1} parent=1 // pred_check_branch
      %53 = sbr.rel (0) target = $region17
    $region16: #{tpu_custom_call.1} parent=1 // pred_region
      _
    $region17: #{tpu_custom_call.1} parent=1 // pred_fallthru
      _
    // Predicated region
    $region18: #{tpu_custom_call.1} parent=1 // pred_check
      _
    $region19: #{tpu_custom_call.1} parent=1 // pred_check_branch
      %55 = sbr.rel (0) target = $region21
    $region20: #{tpu_custom_call.1} parent=1 // pred_region
      _
    $region21: #{tpu_custom_call.1} parent=1 // pred_fallthru
      _
    // Predicated region
    $region22: #{tpu_custom_call.1} parent=1 // pred_check
      _
    $region23: #{tpu_custom_call.1} parent=1 // pred_check_branch
      %57 = sbr.rel (0) target = $region25
    $region24: #{tpu_custom_call.1} parent=1 // pred_region
      %58 = dma.done [#allocation3], 256
    $region25: #{tpu_custom_call.1} parent=1 // pred_fallthru
      _
    // Predicated region
    $region26: #{tpu_custom_call.1} parent=1 // pred_check
      _
    $region27: #{tpu_custom_call.1} parent=1 // pred_check_branch
      %60 = sbr.rel (0) target = $region29
    $region28: #{tpu_custom_call.1} parent=1 // pred_region
      %61 = dma.done [#allocation6], 256
    $region29: #{tpu_custom_call.1} parent=1 // pred_fallthru
      _
    // Predicated region
    $region30: #{tpu_custom_call.1} parent=1 // pred_check
      _
    $region31: #{tpu_custom_call.1} parent=1 // pred_check_branch
      %63 = sbr.rel (0) target = $region33
    $region32: #{tpu_custom_call.1} parent=1 // pred_region
      %64 = dma.done [#allocation6], 256
    $region33: #{tpu_custom_call.1} parent=1 // pred_fallthru
      _
    %v65 = vld [vmem:[#allocation2] sm:$0xff]
    %v66 = vld [vmem:[#allocation2 + $0x8] sm:$0xff]
    %v67 = vld [vmem:[#allocation5] sm:$0xff]
    %v68 = vld [vmem:[#allocation5 + $0x8] sm:$0xff]
    %v69 = vld [vmem:[%s3] sm:$0x1]
    %v71 = vlaneseq
    %v72 = vshrl.u32 %v71, 7
    %v73 = vsub.s32 0, %v72
    %v74 = vrot.slane %v69, %v73
    %vm76 = vcmask 130048
    %v78 = vsel %vm76, %v65, 0
    %v81 = vsel %vm76, %v66, 0
    %83 = vmatprep.subr.mxu0 0.0
    %84 = vmatpush1.msra.mxu0 %v67
    %85 = vmatprep.subr.mxu0 0.0
    %86 = vmatpush1.msra.mxu0 %v68
    %87 = vmatprep.subr.mxu0 0.0
    %88 = vmatpush1.msra.mxu0 0.0
    %89 = vmatprep.subr.mxu0 0.0
    %90 = vmatpush1.msra.mxu0 0.0
    %91 = vmatprep.subr.mxu0 0.0
    %92 = vmatpush1.msra.mxu0 0.0
    %93 = vmatprep.subr.mxu0 0.0
    %94 = vmatpush1.msra.mxu0 0.0
    %95 = vmatprep.subr.mxu0 0.0
    %96 = vmatpush1.msra.mxu0 0.0
    %97 = vmatprep.subr.mxu0 0.0
    %98 = vmatpush1.msra.mxu0 0.0
    %99 = vmatprep.subr.mxu0 0.0
    %100 = vmatpush1.msra.mxu0 0.0
    %101 = vmatprep.subr.mxu0 0.0
    %102 = vmatpush1.msra.mxu0 0.0
    %103 = vmatprep.subr.mxu0 0.0
    %104 = vmatpush1.msra.mxu0 0.0
    %105 = vmatprep.subr.mxu0 0.0
    %106 = vmatpush1.msra.mxu0 0.0
    %107 = vmatprep.subr.mxu0 0.0
    %108 = vmatpush1.msra.mxu0 0.0
    %109 = vmatprep.subr.mxu0 0.0
    %110 = vmatpush1.msra.mxu0 0.0
    %111 = vmatprep.subr.mxu0 0.0
    %112 = vmatpush1.msra.mxu0 0.0
    %113 = vmatprep.subr.mxu0 0.0
    %114 = vmatpush1.msra.mxu0 0.0
    %115 = vmatprep.subr.mxu0 0.0
    %116 = vmatpush1.msra.mxu0 0.0
    %117 = vmatprep.subr.mxu0 0.0
    %118 = vmatpush1.msra.mxu0 0.0
    %119 = vmatprep.subr.mxu0 0.0
    %120 = vmatpush1.msra.mxu0 0.0
    %121 = vmatprep.subr.mxu0 0.0
    %122 = vmatpush1.msra.mxu0 0.0
    %123 = vmatprep.subr.mxu0 0.0
    %124 = vmatpush1.msra.mxu0 0.0
    %125 = vmatprep.subr.mxu0 0.0
    %126 = vmatpush1.msra.mxu0 0.0
    %127 = vmatprep.subr.mxu0 0.0
    %128 = vmatpush1.msra.mxu0 0.0
    %129 = vmatprep.subr.mxu0 0.0
    %130 = vmatpush1.msra.mxu0 0.0
    %131 = vmatprep.subr.mxu0 0.0
    %132 = vmatpush1.msra.mxu0 0.0
    %133 = vmatprep.subr.mxu0 0.0
    %134 = vmatpush1.msra.mxu0 0.0
    %135 = vmatprep.subr.mxu0 0.0
    %136 = vmatpush1.msra.mxu0 0.0
    %137 = vmatprep.subr.mxu0 0.0
    %138 = vmatpush1.msra.mxu0 0.0
    %139 = vmatprep.subr.mxu0 0.0
    %140 = vmatpush1.msra.mxu0 0.0
    %141 = vmatprep.subr.mxu0 0.0
    %142 = vmatpush1.msra.mxu0 0.0
    %143 = vmatprep.subr.mxu0 0.0
    %144 = vmatpush1.msra.mxu0 0.0
    %145 = vmatprep.subr.mxu0 0.0
    %146 = vmatpush1.msra.mxu0 0.0
    %147 = vmatprep.mubr.f32.mxu0 0.0
    %148 = vmatmul.mubr.f32.gmra.mrb[0].mxu0 %v78
    %v149 = vpop.f32.mrb[0].mxu0
    %v150 = vadd.f32 %v74, %v149
    %v151 = vpop.f32.mrb[0].mxu0
    %152 = vmatprep.mubr.f32.mxu0 0.0
    %153 = vmatmul.mubr.f32.gmra.mrb[0].mxu0 %v81
    %v154 = vpop.f32.mrb[0].mxu0
    %v155 = vadd.f32 %v74, %v154
    %v156 = vpop.f32.mrb[0].mxu0
    %157 = vdwg.mxu0
    %158 = vst [vmem:[#allocation8] sm:$0xff] %v150
    %159 = vst [vmem:[#allocation8 + $0x8] sm:$0xff] %v155
    %v160 = vld [vmem:[#allocation7] sm:$0xff]
    %v161 = vld [vmem:[#allocation7 + $0x8] sm:$0xff]
    %v162 = vld [vmem:[%s4] sm:$0x1]
    %v164 = vlaneseq
    %v165 = vshrl.u32 %v164, 7
    %v166 = vsub.s32 0, %v165
    %v167 = vrot.slane %v162, %v166
    %169 = vmatprep.subr.mxu0 0.0
    %170 = vmatpush1.msra.mxu0 %v160
    %171 = vmatprep.subr.mxu0 0.0
    %172 = vmatpush1.msra.mxu0 %v161
    %173 = vmatprep.subr.mxu0 0.0
    %174 = vmatpush1.msra.mxu0 0.0
    %175 = vmatprep.subr.mxu0 0.0
    %176 = vmatpush1.msra.mxu0 0.0
    %177 = vmatprep.subr.mxu0 0.0
    %178 = vmatpush1.msra.mxu0 0.0
    %179 = vmatprep.subr.mxu0 0.0
    %180 = vmatpush1.msra.mxu0 0.0
    %181 = vmatprep.subr.mxu0 0.0
    %182 = vmatpush1.msra.mxu0 0.0
    %183 = vmatprep.subr.mxu0 0.0
    %184 = vmatpush1.msra.mxu0 0.0
    %185 = vmatprep.subr.mxu0 0.0
    %186 = vmatpush1.msra.mxu0 0.0
    %187 = vmatprep.subr.mxu0 0.0
    %188 = vmatpush1.msra.mxu0 0.0
    %189 = vmatprep.subr.mxu0 0.0
    %190 = vmatpush1.msra.mxu0 0.0
    %191 = vmatprep.subr.mxu0 0.0
    %192 = vmatpush1.msra.mxu0 0.0
    %193 = vmatprep.subr.mxu0 0.0
    %194 = vmatpush1.msra.mxu0 0.0
    %195 = vmatprep.subr.mxu0 0.0
    %196 = vmatpush1.msra.mxu0 0.0
    %197 = vmatprep.subr.mxu0 0.0
    %198 = vmatpush1.msra.mxu0 0.0
    %199 = vmatprep.subr.mxu0 0.0
    %200 = vmatpush1.msra.mxu0 0.0
    %201 = vmatprep.subr.mxu0 0.0
    %202 = vmatpush1.msra.mxu0 0.0
    %203 = vmatprep.subr.mxu0 0.0
    %204 = vmatpush1.msra.mxu0 0.0
    %205 = vmatprep.subr.mxu0 0.0
    %206 = vmatpush1.msra.mxu0 0.0
    %207 = vmatprep.subr.mxu0 0.0
    %208 = vmatpush1.msra.mxu0 0.0
    %209 = vmatprep.subr.mxu0 0.0
    %210 = vmatpush1.msra.mxu0 0.0
    %211 = vmatprep.subr.mxu0 0.0
    %212 = vmatpush1.msra.mxu0 0.0
    %213 = vmatprep.subr.mxu0 0.0
    %214 = vmatpush1.msra.mxu0 0.0
    %215 = vmatprep.subr.mxu0 0.0
    %216 = vmatpush1.msra.mxu0 0.0
    %217 = vmatprep.subr.mxu0 0.0
    %218 = vmatpush1.msra.mxu0 0.0
    %219 = vmatprep.subr.mxu0 0.0
    %220 = vmatpush1.msra.mxu0 0.0
    %221 = vmatprep.subr.mxu0 0.0
    %222 = vmatpush1.msra.mxu0 0.0
    %223 = vmatprep.subr.mxu0 0.0
    %224 = vmatpush1.msra.mxu0 0.0
    %225 = vmatprep.subr.mxu0 0.0
    %226 = vmatpush1.msra.mxu0 0.0
    %227 = vmatprep.subr.mxu0 0.0
    %228 = vmatpush1.msra.mxu0 0.0
    %229 = vmatprep.subr.mxu0 0.0
    %230 = vmatpush1.msra.mxu0 0.0
    %231 = vmatprep.subr.mxu0 0.0
    %232 = vmatpush1.msra.mxu0 0.0
    %233 = vmatprep.mubr.f32.mxu0 0.0
    %234 = vmatmul.mubr.f32.gmra.mrb[0].mxu0 %v78
    %v235 = vpop.f32.mrb[0].mxu0
    %v236 = vadd.f32 %v167, %v235
    %v237 = vpop.f32.mrb[0].mxu0
    %238 = vmatprep.mubr.f32.mxu0 0.0
    %239 = vmatmul.mubr.f32.gmra.mrb[0].mxu0 %v81
    %v240 = vpop.f32.mrb[0].mxu0
    %v241 = vadd.f32 %v167, %v240
    %v242 = vpop.f32.mrb[0].mxu0
    %243 = vdwg.mxu0
    %244 = vst [vmem:[#allocation9] sm:$0xff] %v236
    %245 = vst [vmem:[#allocation9 + $0x8] sm:$0xff] %v241
    // Predicated region
    $region34: #{tpu_custom_call.1} parent=1 // pred_check
      _
    $region35: #{tpu_custom_call.1} parent=1 // pred_check_branch
      %247 = sbr.rel (0) target = $region37
    $region36: #{tpu_custom_call.1} parent=1 // pred_region
      %s249 = ssub.s32 256, 256
      %250 = vsyncadd [#allocation4], %s249
      %s251 = sshll.u32 [#allocation8], 4
      %s252 = int_to_ptr.vmem [resolvable:$true] %s251
      %257 = dma.vmem_to_hbm [thread:$0]  %s252, 256, %s5, [#allocation4], 128, 128, 8
    $region37: #{tpu_custom_call.1} parent=1 // pred_fallthru
      _
    // Predicated region
    $region38: #{tpu_custom_call.1} parent=1 // pred_check
      _
    $region39: #{tpu_custom_call.1} parent=1 // pred_check_branch
      %259 = sbr.rel (0) target = $region41
    $region40: #{tpu_custom_call.1} parent=1 // pred_region
      %s261 = ssub.s32 256, 256
      %262 = vsyncadd [#allocation10], %s261
      %s263 = sshll.u32 [#allocation9], 4
      %s264 = int_to_ptr.vmem [resolvable:$true] %s263
      %269 = dma.vmem_to_hbm [thread:$0]  %s264, 256, %s6, [#allocation10], 128, 128, 8
    $region41: #{tpu_custom_call.1} parent=1 // pred_fallthru
      _
    // Predicated region
    $region42: #{tpu_custom_call.1} parent=1 // pred_check
      _
    $region43: #{tpu_custom_call.1} parent=1 // pred_check_branch
      %271 = sbr.rel (0) target = $region45
    $region44: #{tpu_custom_call.1} parent=1 // pred_region
      %272 = dma.done [#allocation4], 256
    $region45: #{tpu_custom_call.1} parent=1 // pred_fallthru
      _
    // Predicated region
    $region46: #{tpu_custom_call.1} parent=1 // pred_check
      _
    $region47: #{tpu_custom_call.1} parent=1 // pred_check_branch
      %274 = sbr.rel (0) target = $region49
    $region48: #{tpu_custom_call.1} parent=1 // pred_region
      %275 = dma.done [#allocation10], 256
    $region49: #{tpu_custom_call.1} parent=1 // pred_fallthru
      _
    %276 = vsyncpa [#allocation3], 1
    %277 = vsyncpa [#allocation6], 1
    %278 = vsyncpa [#allocation4], 1
    %279 = vsyncpa [#allocation10], 1

</llo_original>
